<compile_context>
chip_gen: v7x
topology: tpu7x:2x2x1
jax: 0.10.0
libtpu: 0.0.40
codegen_flags: <defaults>
</compile_context>

<pallas_src>
import functools

import jax
import jax.numpy as jnp
from jax.experimental import pallas as pl
from jax.experimental.pallas import tpu as pltpu

_LANES = 128


def _round_up(x, m):
    return ((x + m - 1) // m) * m


def _default_num_cores():
    # 2 on v7x (2 TensorCores/chip), 1 on v5e/v6e; fall back to 1 if the
    # device object does not expose a core count.
    try:
        return max(1, int(getattr(jax.devices()[0], "num_cores", 1)))
    except Exception:  # pragma: no cover - defensive
        return 1


def _cfr_loss_kernel(y0h_ref, y0f_ref, y1h_ref, y1f_ref, out_ref, acc_ref, *,
                     rows, block_rows, steps, needs_mask):
    """Grid = (num_cores, steps).  Each (c, j) processes one (block_rows, 128)
    row-block of all four arrays and accumulates squared diffs into a per-core
    VMEM vector accumulator; the per-core partial sum is written at j==last."""
    c = pl.program_id(0)
    j = pl.program_id(1)

    @pl.when(j == 0)
    def _():
        acc_ref[...] = jnp.zeros_like(acc_ref)

    # Upcast per-tile (inputs may be bf16 in HBM; compute in f32).
    d0 = y0h_ref[...].astype(jnp.float32) - y0f_ref[...].astype(jnp.float32)
    d1 = y1h_ref[...].astype(jnp.float32) - y1f_ref[...].astype(jnp.float32)
    contrib = d0 * d0 + d1 * d1

    if needs_mask:
        # First global row covered by this block.
        g0 = (c * steps + j) * block_rows

        @pl.when(g0 + block_rows <= rows)          # hot path: fully valid
        def _():
            acc_ref[...] += contrib

        @pl.when(g0 + block_rows > rows)           # boundary / fully-OOB block
        def _():
            row = jax.lax.broadcasted_iota(jnp.int32, (block_rows, _LANES), 0)
            valid = (g0 + row) < rows              # row mask; OOB rows are garbage
            acc_ref[...] += jnp.where(valid, contrib, 0.0)
    else:
        acc_ref[...] += contrib

    @pl.when(j == steps - 1)
    def _():
        # Single cross-lane reduction per core, once, at finalize.
        out_ref[0, 0] = jnp.sum(acc_ref[...])


def cfr_loss(y1_hat, y0_hat, y1_factual, y0_factual, treatment=None, phi=None,
             alpha=3, metric="W1", *, max_block_rows=2048, num_cores=None):
    """Pallas implementation of CFRLoss.forward.

    treatment / phi / alpha / metric mirror the PyTorch signature but (as in
    the reference forward) do not affect the result.
    """
    del treatment, phi, alpha, metric  # unused in the reference forward
    assert max_block_rows % 8 == 0 and max_block_rows >= 8

    n = 1
    for d in jnp.shape(y0_hat):
        n *= int(d)
    assert n > 0, "CFRLoss is undefined for empty inputs"

    if num_cores is None:
        num_cores = _default_num_cores()
    num_cores = max(1, int(num_cores))

    rows = -(-n // _LANES)                     # ceil(n / 128)
    pad = rows * _LANES - n                    # 0..127 elements

    block_rows = min(max_block_rows, _round_up(rows, 8))
    nblocks = -(-rows // block_rows)
    steps = -(-nblocks // num_cores)
    # Mask only needed if the (cores x steps x block_rows) coverage overshoots.
    needs_mask = (num_cores * steps * block_rows != rows)

    def _prep(x):
        # Keep the input dtype (bf16 stays bf16 -> half the HBM traffic);
        # the kernel upcasts per tile.  reshape is metadata-only; the pad
        # (<=127 zeros, only when N % 128 != 0) cancels exactly in the diffs.
        x = jnp.asarray(x).reshape(-1)
        if pad:
            x = jnp.pad(x, (0, pad))
        return x.reshape(rows, _LANES)

    a_y0h, a_y0f = _prep(y0_hat), _prep(y0_factual)
    a_y1h, a_y1f = _prep(y1_hat), _prep(y1_factual)

    def idx(c, j):
        # Clamp so fully-OOB grid steps (possible after the core split) re-read
        # the last valid block; their contribution is masked to zero in-kernel.
        return (jnp.minimum(c * steps + j, nblocks - 1), 0)

    in_spec = pl.BlockSpec((block_rows, _LANES), idx)

    kernel = functools.partial(
        _cfr_loss_kernel, rows=rows, block_rows=block_rows, steps=steps,
        needs_mask=needs_mask)

    partials = pl.pallas_call(
        kernel,
        out_shape=jax.ShapeDtypeStruct((num_cores, 1), jnp.float32),
        grid_spec=pltpu.PrefetchScalarGridSpec(
            num_scalar_prefetch=0,
            grid=(num_cores, steps),
            in_specs=[in_spec, in_spec, in_spec, in_spec],
            out_specs=pl.BlockSpec((1, 1), lambda c, j: (c, 0),
                                   memory_space=pltpu.SMEM),
            scratch_shapes=[pltpu.VMEM((block_rows, _LANES), jnp.float32)],
        ),
        compiler_params=pltpu.CompilerParams(
            dimension_semantics=("parallel", "arbitrary")),
    )(a_y0h, a_y0f, a_y1h, a_y1f)

    # Add the per-core partials and normalize by the true element count.
    return jnp.sum(partials) * (1.0 / float(n))


if __name__ == "__main__":
    key = jax.random.PRNGKey(0)
    ks = jax.random.split(key, 10)

    # --- shapes consistent with the module's forward: batch=8 outcome
    #     vectors (N,1), representation phi (N,32), binary treatment (N,1).
    N, H = 8, 32
    y1_hat = jax.random.normal(ks[0], (N, 1), jnp.float32)
    y0_hat = jax.random.normal(ks[1], (N, 1), jnp.float32)
    y1_factual = jax.random.normal(ks[2], (N, 1), jnp.float32)
    y0_factual = jax.random.normal(ks[3], (N, 1), jnp.float32)
    treatment = (jax.random.uniform(ks[4], (N, 1)) > 0.5).astype(jnp.float32)
    phi = jax.random.normal(ks[5], (N, H), jnp.float32)

    loss = cfr_loss(y1_hat, y0_hat, y1_factual, y0_factual, treatment, phi)
    loss = jax.block_until_ready(loss)
    ref = (jnp.mean((y0_hat - y0_factual) ** 2)
           + jnp.mean((y1_hat - y1_factual) ** 2))
    assert jnp.allclose(loss, ref, rtol=1e-5, atol=1e-6), (loss, ref)

    # --- ragged N, small tiles, explicit 2-way core split:
    #     exercises the masked boundary block, multi-step accumulation and
    #     the per-core partial outputs.
    N2 = 3000
    a1 = jax.random.normal(ks[6], (N2, 1), jnp.float32)
    a0 = jax.random.normal(ks[7], (N2, 1), jnp.float32)
    f1 = jax.random.normal(ks[8], (N2, 1), jnp.float32)
    f0 = jax.random.normal(ks[9], (N2, 1), jnp.float32)
    loss2 = cfr_loss(a1, a0, f1, f0, max_block_rows=8, num_cores=2)
    loss2 = jax.block_until_ready(loss2)
    ref2 = jnp.mean((a0 - f0) ** 2) + jnp.mean((a1 - f1) ** 2)
    assert jnp.allclose(loss2, ref2, rtol=1e-5, atol=1e-6), (loss2, ref2)

    # --- N multiple of 128: zero-copy wrapper path with default tiles.
    N3 = 8192
    b1 = jax.random.normal(ks[6], (N3, 1), jnp.float32)
    b0 = jax.random.normal(ks[7], (N3, 1), jnp.float32)
    g1 = jax.random.normal(ks[8], (N3, 1), jnp.float32)
    g0 = jax.random.normal(ks[9], (N3, 1), jnp.float32)
    loss3 = cfr_loss(b1, b0, g1, g0)
    loss3 = jax.block_until_ready(loss3)
    ref3 = jnp.mean((b0 - g0) ** 2) + jnp.mean((b1 - g1) ** 2)
    assert jnp.allclose(loss3, ref3, rtol=1e-5, atol=1e-6), (loss3, ref3)

    print("KERNEL_OK")
</pallas_src>

<mosaic_0001>
module attributes {stable_mosaic.version = 11 : i64} {
  func.func @_cfr_loss_kernel(%arg0: i32, %arg1: i32, %arg2: memref<8x128xf32, #tpu.memory_space<vmem>>, %arg3: memref<8x128xf32, #tpu.memory_space<vmem>>, %arg4: memref<8x128xf32, #tpu.memory_space<vmem>>, %arg5: memref<8x128xf32, #tpu.memory_space<vmem>>, %arg6: memref<1x1xf32, #tpu.memory_space<smem>>, %arg7: memref<8x128xf32, #tpu.memory_space<vmem>>) attributes {dimension_semantics = [#tpu.dimension_semantics<parallel>, #tpu.dimension_semantics<arbitrary>], iteration_bounds = array<i64: 1, 1>, scalar_prefetch = 0 : i64, scratch_operands = 1 : i64, tpu.core_type = #tpu.core_type<tc>, window_params = [{transform_indices = @transform_0, window_bounds = array<i64: 8, 128>}, {transform_indices = @transform_1, window_bounds = array<i64: 8, 128>}, {transform_indices = @transform_2, window_bounds = array<i64: 8, 128>}, {transform_indices = @transform_3, window_bounds = array<i64: 8, 128>}, {transform_indices = @transform_4, window_bounds = array<i64: 1, 1>}]} {
    %c0_i32 = arith.constant 0 : i32
    %0 = arith.cmpi eq, %arg1, %c0_i32 : i32
    %1 = arith.extui %0 : i1 to i32
    %c0_i32_0 = arith.constant 0 : i32
    %2 = arith.cmpi ne, %1, %c0_i32_0 : i32
    scf.if %2 {
      %cst = arith.constant 0.000000e+00 : f32
      %26 = vector.broadcast %cst : f32 to vector<8x128xf32>
      %c0_16 = arith.constant 0 : index
      %c0_17 = arith.constant 0 : index
      %27 = vector.load %arg7[%c0_16, %c0_17] : memref<8x128xf32, #tpu.memory_space<vmem>>, vector<8x128xf32>
      tpu.vector_store %arg7[%c0_16, %c0_17], %26 {strides = array<i32>} : memref<8x128xf32, #tpu.memory_space<vmem>>, vector<8x128xf32>,
    } else {
    }
    %c0 = arith.constant 0 : index
    %c0_1 = arith.constant 0 : index
    %3 = vector.load %arg2[%c0, %c0_1] : memref<8x128xf32, #tpu.memory_space<vmem>>, vector<8x128xf32>
    %c0_2 = arith.constant 0 : index
    %c0_3 = arith.constant 0 : index
    %4 = vector.load %arg3[%c0_2, %c0_3] : memref<8x128xf32, #tpu.memory_space<vmem>>, vector<8x128xf32>
    %5 = arith.subf %3, %4 : vector<8x128xf32>
    %c0_4 = arith.constant 0 : index
    %c0_5 = arith.constant 0 : index
    %6 = vector.load %arg4[%c0_4, %c0_5] : memref<8x128xf32, #tpu.memory_space<vmem>>, vector<8x128xf32>
    %c0_6 = arith.constant 0 : index
    %c0_7 = arith.constant 0 : index
    %7 = vector.load %arg5[%c0_6, %c0_7] : memref<8x128xf32, #tpu.memory_space<vmem>>, vector<8x128xf32>
    %8 = arith.subf %6, %7 : vector<8x128xf32>
    %9 = arith.mulf %5, %5 : vector<8x128xf32>
    %10 = arith.mulf %8, %8 : vector<8x128xf32>
    %11 = arith.addf %9, %10 : vector<8x128xf32>
    %c1_i32 = arith.constant 1 : i32
    %12 = arith.muli %arg0, %c1_i32 : i32
    %13 = arith.addi %12, %arg1 : i32
    %c8_i32 = arith.constant 8 : i32
    %14 = arith.muli %13, %c8_i32 : i32
    %c8_i32_8 = arith.constant 8 : i32
    %15 = arith.addi %14, %c8_i32_8 : i32
    %c1_i32_9 = arith.constant 1 : i32
    %16 = arith.cmpi sle, %15, %c1_i32_9 : i32
    %17 = arith.extui %16 : i1 to i32
    %c0_i32_10 = arith.constant 0 : i32
    %18 = arith.cmpi ne, %17, %c0_i32_10 : i32
    scf.if %18 {
      %c0_16 = arith.constant 0 : index
      %c0_17 = arith.constant 0 : index
      %26 = vector.load %arg7[%c0_16, %c0_17] : memref<8x128xf32, #tpu.memory_space<vmem>>, vector<8x128xf32>
      %27 = arith.addf %26, %11 : vector<8x128xf32>
      %c0_18 = arith.constant 0 : index
      %c0_19 = arith.constant 0 : index
      %28 = vector.load %arg7[%c0_18, %c0_19] : memref<8x128xf32, #tpu.memory_space<vmem>>, vector<8x128xf32>
      tpu.vector_store %arg7[%c0_18, %c0_19], %27 {strides = array<i32>} : memref<8x128xf32, #tpu.memory_space<vmem>>, vector<8x128xf32>,
    } else {
    }
    %c8_i32_11 = arith.constant 8 : i32
    %19 = arith.addi %14, %c8_i32_11 : i32
    %c1_i32_12 = arith.constant 1 : i32
    %20 = arith.cmpi sgt, %19, %c1_i32_12 : i32
    %21 = arith.extui %20 : i1 to i32
    %c0_i32_13 = arith.constant 0 : i32
    %22 = arith.cmpi ne, %21, %c0_i32_13 : i32
    scf.if %22 {
      %26 = tpu.iota {dimensions = array<i32: 0>} : vector<8x128xi32>
      %27 = vector.broadcast %14 : i32 to vector<8x128xi32>
      %28 = arith.addi %27, %26 : vector<8x128xi32>
      %c1_i32_16 = arith.constant 1 : i32
      %29 = vector.broadcast %c1_i32_16 : i32 to vector<8x128xi32>
      %30 = arith.cmpi slt, %28, %29 : vector<8x128xi32>
      %c0_17 = arith.constant 0 : index
      %c0_18 = arith.constant 0 : index
      %31 = vector.load %arg7[%c0_17, %c0_18] : memref<8x128xf32, #tpu.memory_space<vmem>>, vector<8x128xf32>
      %cst = arith.constant 0.000000e+00 : f32
      %32 = vector.broadcast %cst : f32 to vector<8x128xf32>
      %33 = arith.select %30, %11, %32 : vector<8x128xi1>, vector<8x128xf32>
      %34 = arith.addf %31, %33 : vector<8x128xf32>
      %c0_19 = arith.constant 0 : index
      %c0_20 = arith.constant 0 : index
      %35 = vector.load %arg7[%c0_19, %c0_20] : memref<8x128xf32, #tpu.memory_space<vmem>>, vector<8x128xf32>
      tpu.vector_store %arg7[%c0_19, %c0_20], %34 {strides = array<i32>} : memref<8x128xf32, #tpu.memory_space<vmem>>, vector<8x128xf32>,
    } else {
    }
    %c0_i32_14 = arith.constant 0 : i32
    %23 = arith.cmpi eq, %arg1, %c0_i32_14 : i32
    %24 = arith.extui %23 : i1 to i32
    %c0_i32_15 = arith.constant 0 : i32
    %25 = arith.cmpi ne, %24, %c0_i32_15 : i32
    scf.if %25 {
      %c0_16 = arith.constant 0 : index
      %c0_17 = arith.constant 0 : index
      %26 = vector.load %arg7[%c0_16, %c0_17] : memref<8x128xf32, #tpu.memory_space<vmem>>, vector<8x128xf32>
      %27 = vector.shape_cast %26 : vector<8x128xf32> to vector<1x8x128xf32>
      %cst = arith.constant dense<0.000000e+00> : vector<1xf32>
      %28 = vector.multi_reduction <add>, %27, %cst [1, 2] : vector<1x8x128xf32> to vector<1xf32>
      %29 = vector.shape_cast %28 : vector<1xf32> to vector<1x1x1xf32>
      %30 = vector.extract %29[0, 0, 0] : f32 from vector<1x1x1xf32>
      %c0_18 = arith.constant 0 : index
      %c0_19 = arith.constant 0 : index
      %31 = memref.load %arg6[%c0_18, %c0_19] : memref<1x1xf32, #tpu.memory_space<smem>>
      memref.store %30, %arg6[%c0_18, %c0_19] : memref<1x1xf32, #tpu.memory_space<smem>>
    } else {
    }
    return
  }
  func.func @transform_0(%arg0: i32, %arg1: i32) -> (i32, i32) {
    %c1_i32 = arith.constant 1 : i32
    %0 = arith.muli %arg0, %c1_i32 : i32
    %1 = arith.addi %0, %arg1 : i32
    %c0_i32 = arith.constant 0 : i32
    %2 = arith.minsi %1, %c0_i32 : i32
    %c0_i32_0 = arith.constant 0 : i32
    %c0_i32_1 = arith.constant 0 : i32
    return %2, %c0_i32_0 : i32, i32
  }
  func.func @transform_1(%arg0: i32, %arg1: i32) -> (i32, i32) {
    %c1_i32 = arith.constant 1 : i32
    %0 = arith.muli %arg0, %c1_i32 : i32
    %1 = arith.addi %0, %arg1 : i32
    %c0_i32 = arith.constant 0 : i32
    %2 = arith.minsi %1, %c0_i32 : i32
    %c0_i32_0 = arith.constant 0 : i32
    %c0_i32_1 = arith.constant 0 : i32
    return %2, %c0_i32_0 : i32, i32
  }
  func.func @transform_2(%arg0: i32, %arg1: i32) -> (i32, i32) {
    %c1_i32 = arith.constant 1 : i32
    %0 = arith.muli %arg0, %c1_i32 : i32
    %1 = arith.addi %0, %arg1 : i32
    %c0_i32 = arith.constant 0 : i32
    %2 = arith.minsi %1, %c0_i32 : i32
    %c0_i32_0 = arith.constant 0 : i32
    %c0_i32_1 = arith.constant 0 : i32
    return %2, %c0_i32_0 : i32, i32
  }
  func.func @transform_3(%arg0: i32, %arg1: i32) -> (i32, i32) {
    %c1_i32 = arith.constant 1 : i32
    %0 = arith.muli %arg0, %c1_i32 : i32
    %1 = arith.addi %0, %arg1 : i32
    %c0_i32 = arith.constant 0 : i32
    %2 = arith.minsi %1, %c0_i32 : i32
    %c0_i32_0 = arith.constant 0 : i32
    %c0_i32_1 = arith.constant 0 : i32
    return %2, %c0_i32_0 : i32, i32
  }
  func.func @transform_4(%arg0: i32, %arg1: i32) -> (i32, i32) {
    %c0_i32 = arith.constant 0 : i32
    %c0_i32_0 = arith.constant 0 : i32
    return %arg0, %c0_i32 : i32, i32
  }
}

</mosaic_0001>

<llo_original>
// kernel: tpu_custom_call.1
$region0: #{tpu_custom_call.1}
  #allocation0 [shape = 'u32[]', space=smem, size = 0x4, offset = 0x4, fixed_abs, tag = 'smem constant byte address 0x4 - core index']
  #allocation1 [shape = 'u32[144,128]{1,0:T(1,128)}', space=vmem, size = 0x12000, scoped, tag = 'internal scratch']
  #allocation2 [shape = 'f32[8,128]{1,0:T(8,128)}', space=vmem, size = 0x1000, scoped, tag = 'scratch operand']
  %s0 = inlined_call_operand.hbm [shape: f32[1,128], index: 0, kind: input, shape index: {}]
  %s1 = inlined_call_operand.vmem [shape: f32[1,128], index: 1, kind: input, shape index: {}]
  %s2 = inlined_call_operand.vmem [shape: f32[1,128], index: 2, kind: input, shape index: {}]
  %s3 = inlined_call_operand.vmem [shape: f32[1,128], index: 3, kind: input, shape index: {}]
  %s4 = inlined_call_operand.hbm [shape: f32[1,1], index: 4, kind: output, shape index: {}]
  %s5 = sld [smem:[#allocation0]]
  $region46: #{tpu_custom_call.1} parent=0
    _
  %s7 = ssub.s32 1, %s5
  %s8 = scalar_select 0, %s7, %s5
  $region1: #{tpu_custom_call.1} parent=0
    #allocation3 [shape = 'u8[4096]{0}', space=vmem, size = 0x1000, scoped, tag = 'input window, operand 0, single buffered']
    #allocation4 [shape = 's32[1]{0}', space=sflag, size = 0x4, scoped, tag = 'scoped memory for tpu_custom_call.1']
    #allocation5 [shape = 's32[1]{0}', space=sflag, size = 0x4, scoped, tag = 'scoped memory for tpu_custom_call.1']
    #allocation6 [shape = 'u8[512]{0}', space=smem, size = 0x200, scoped, tag = 'output window, operand 0, single buffered']
    %9 = vsyncpa [#allocation4], 0
    %10 = vsyncpa [#allocation5], 0
    // Predicated region
    $region2: #{tpu_custom_call.1} parent=1 // pred_check
      _
    $region3: #{tpu_custom_call.1} parent=1 // pred_check_branch
      %12 = sbr.rel (0) target = $region5
    $region4: #{tpu_custom_call.1} parent=1 // pred_region
      %s13 = sadd.s32 0, 0
      %p14 = scmp.lt.s32.totalorder %s13, 0
      %s15 = scalar_select %p14, %s13, 0
      %s16 = smul.u32 8, %s15
      %s17 = ssub.s32 1, %s16
      %s18 = smul.u32 16, %s17
      %s20 = ssub.s32 128, %s18
      %21 = vsyncadd [#allocation4], %s20
      %p22 = scmp.ne.s32.totalorder 0, %s18
      %s23 = smul.addr %s16, 16
      %s24 = scalar_lea.hbm %s0, %s23
      %s25 = sshll.u32 [#allocation3], 4
      %s26 = int_to_ptr.vmem [resolvable:$true] %s25
      %s27 = sshll.u32 %s17, 4
      %31 = dma.hbm_to_vmem [thread:$0]  (%p22), %s24, %s27, %s26, [#allocation4], 16, 16, 1
    $region5: #{tpu_custom_call.1} parent=1 // pred_fallthru
      _
    // Predicated region
    $region6: #{tpu_custom_call.1} parent=1 // pred_check
      _
    $region7: #{tpu_custom_call.1} parent=1 // pred_check_branch
      %33 = sbr.rel (0) target = $region9
    $region8: #{tpu_custom_call.1} parent=1 // pred_region
      %s34 = sadd.s32 0, 0
      %p35 = scmp.lt.s32.totalorder %s34, 0
      %s36 = scalar_select %p35, %s34, 0
      %s37 = smul.u32 8, %s36
      %s38 = ssub.s32 1, %s37
      %s39 = smul.u32 16, %s38
      %p40 = scmp.lt.s32.totalorder %s37, 0
      %s41 = scalar_select %p40, %s37, 0
      %s42 = scalar_lea.vmem %s1, %s41
      %s43 = sadd.s32 0, 0
      %p44 = scmp.lt.s32.totalorder %s43, 0
      %s45 = scalar_select %p44, %s43, 0
      %s46 = smul.u32 8, %s45
      %s47 = ssub.s32 1, %s46
      %s48 = smul.u32 16, %s47
    $region9: #{tpu_custom_call.1} parent=1 // pred_fallthru
      _
    // Predicated region
    $region10: #{tpu_custom_call.1} parent=1 // pred_check
      _
    $region11: #{tpu_custom_call.1} parent=1 // pred_check_branch
      %50 = sbr.rel (0) target = $region13
    $region12: #{tpu_custom_call.1} parent=1 // pred_region
      %s51 = sadd.s32 0, 0
      %p52 = scmp.lt.s32.totalorder %s51, 0
      %s53 = scalar_select %p52, %s51, 0
      %s54 = smul.u32 8, %s53
      %s55 = ssub.s32 1, %s54
      %s56 = smul.u32 16, %s55
      %p57 = scmp.lt.s32.totalorder %s54, 0
      %s58 = scalar_select %p57, %s54, 0
      %s59 = scalar_lea.vmem %s2, %s58
      %s60 = sadd.s32 0, 0
      %p61 = scmp.lt.s32.totalorder %s60, 0
      %s62 = scalar_select %p61, %s60, 0
      %s63 = smul.u32 8, %s62
      %s64 = ssub.s32 1, %s63
      %s65 = smul.u32 16, %s64
    $region13: #{tpu_custom_call.1} parent=1 // pred_fallthru
      _
    // Predicated region
    $region14: #{tpu_custom_call.1} parent=1 // pred_check
      _
    $region15: #{tpu_custom_call.1} parent=1 // pred_check_branch
      %67 = sbr.rel (0) target = $region17
    $region16: #{tpu_custom_call.1} parent=1 // pred_region
      %s68 = sadd.s32 0, 0
      %p69 = scmp.lt.s32.totalorder %s68, 0
      %s70 = scalar_select %p69, %s68, 0
      %s71 = smul.u32 8, %s70
      %s72 = ssub.s32 1, %s71
      %s73 = smul.u32 16, %s72
      %p74 = scmp.lt.s32.totalorder %s71, 0
      %s75 = scalar_select %p74, %s71, 0
      %s76 = scalar_lea.vmem %s3, %s75
      %s77 = sadd.s32 0, 0
      %p78 = scmp.lt.s32.totalorder %s77, 0
      %s79 = scalar_select %p78, %s77, 0
      %s80 = smul.u32 8, %s79
      %s81 = ssub.s32 1, %s80
      %s82 = smul.u32 16, %s81
    $region17: #{tpu_custom_call.1} parent=1 // pred_fallthru
      _
    // Predicated region
    $region18: #{tpu_custom_call.1} parent=1 // pred_check
      _
    $region19: #{tpu_custom_call.1} parent=1 // pred_check_branch
      %84 = sbr.rel (0) target = $region21
    $region20: #{tpu_custom_call.1} parent=1 // pred_region
      %85 = dma.done [#allocation4], 128
    $region21: #{tpu_custom_call.1} parent=1 // pred_fallthru
      _
    %s86 = sadd.s32 0, 0
    %p87 = scmp.lt.s32.totalorder %s86, 0
    %s88 = scalar_select %p87, %s86, 0
    %s89 = smul.u32 8, %s88
    %s90 = ssub.s32 1, %s89
    %s91 = smul.u32 16, %s90
    %p92 = scmp.lt.s32.totalorder %s89, 0
    %s93 = scalar_select %p92, %s89, 0
    %s94 = scalar_lea.vmem %s1, %s93
    %s95 = sadd.s32 0, 0
    %p96 = scmp.lt.s32.totalorder %s95, 0
    %s97 = scalar_select %p96, %s95, 0
    %s98 = smul.u32 8, %s97
    %s99 = ssub.s32 1, %s98
    %s100 = smul.u32 16, %s99
    %p101 = scmp.lt.s32.totalorder %s98, 0
    %s102 = scalar_select %p101, %s98, 0
    %s103 = scalar_lea.vmem %s2, %s102
    %s104 = sadd.s32 0, 0
    %p105 = scmp.lt.s32.totalorder %s104, 0
    %s106 = scalar_select %p105, %s104, 0
    %s107 = smul.u32 8, %s106
    %s108 = ssub.s32 1, %s107
    %s109 = smul.u32 16, %s108
    %p110 = scmp.lt.s32.totalorder %s107, 0
    %s111 = scalar_select %p110, %s107, 0
    %s112 = scalar_lea.vmem %s3, %s111
    %s113 = sadd.s32 0, 0
    %p114 = scmp.lt.s32.totalorder %s113, 0
    %s115 = scalar_select %p114, %s113, 0
    %s116 = smul.u32 8, %s115
    %s117 = ssub.s32 1, %s116
    %s118 = smul.u32 16, %s117
    %s119 = sadd.s32 0, 0
    %p120 = scmp.lt.s32.totalorder %s119, 0
    %s121 = scalar_select %p120, %s119, 0
    %s122 = smul.u32 8, %s121
    %s123 = ssub.s32 1, %s122
    %s124 = smul.u32 16, %s123
    %p125 = scmp.lt.s32.totalorder %s122, 0
    %s126 = scalar_select %p125, %s122, 0
    %s127 = scalar_lea.vmem %s1, %s126
    %s128 = sadd.s32 0, 0
    %p129 = scmp.lt.s32.totalorder %s128, 0
    %s130 = scalar_select %p129, %s128, 0
    %s131 = smul.u32 8, %s130
    %s132 = ssub.s32 1, %s131
    %s133 = smul.u32 16, %s132
    %s134 = sadd.s32 0, 0
    %p135 = scmp.lt.s32.totalorder %s134, 0
    %s136 = scalar_select %p135, %s134, 0
    %s137 = smul.u32 8, %s136
    %s138 = ssub.s32 1, %s137
    %s139 = smul.u32 16, %s138
    %p140 = scmp.lt.s32.totalorder %s137, 0
    %s141 = scalar_select %p140, %s137, 0
    %s142 = scalar_lea.vmem %s2, %s141
    %s143 = sadd.s32 0, 0
    %p144 = scmp.lt.s32.totalorder %s143, 0
    %s145 = scalar_select %p144, %s143, 0
    %s146 = smul.u32 8, %s145
    %s147 = ssub.s32 1, %s146
    %s148 = smul.u32 16, %s147
    %s149 = sadd.s32 0, 0
    %p150 = scmp.lt.s32.totalorder %s149, 0
    %s151 = scalar_select %p150, %s149, 0
    %s152 = smul.u32 8, %s151
    %s153 = ssub.s32 1, %s152
    %s154 = smul.u32 16, %s153
    %p155 = scmp.lt.s32.totalorder %s152, 0
    %s156 = scalar_select %p155, %s152, 0
    %s157 = scalar_lea.vmem %s3, %s156
    %s158 = sadd.s32 0, 0
    %p159 = scmp.lt.s32.totalorder %s158, 0
    %s160 = scalar_select %p159, %s158, 0
    %s161 = smul.u32 8, %s160
    %s162 = ssub.s32 1, %s161
    %s163 = smul.u32 16, %s162
    %p164 = scmp.eq.s32.totalorder 0, 0
    // Predicated region
    $region22: #{tpu_custom_call.1} parent=1 // pred_check
      %p165 = pneg %p164
    $region23: #{tpu_custom_call.1} parent=1 // pred_check_branch
      %167 = sbr.rel (%p165) target = $region25
    $region24: #{tpu_custom_call.1} parent=1 // pred_region
      %168 = vst [vmem:[#allocation2] sm:$0xff] 0.0
    $region25: #{tpu_custom_call.1} parent=1 // pred_fallthru
      _
    %v169 = vld [vmem:[#allocation3] sm:$0xff]
    %v170 = vld [vmem:[%s127] sm:$0xff]
    %v171 = vsub.f32 %v169, %v170
    %v172 = vld [vmem:[%s142] sm:$0xff]
    %v173 = vld [vmem:[%s157] sm:$0xff]
    %v174 = vsub.f32 %v172, %v173
    %v175 = vmul.f32 %v171, %v171
    %v176 = vmul.f32 %v174, %v174
    %v177 = vadd.f32 %v175, %v176
    %s178 = sadd.s32 0, 0
    %s179 = smul.u32 %s178, 8
    %s180 = sadd.s32 %s179, 8
    %p181 = scmp.le.s32.totalorder %s180, 1
    // Predicated region
    $region26: #{tpu_custom_call.1} parent=1 // pred_check
      %p182 = pneg %p181
    $region27: #{tpu_custom_call.1} parent=1 // pred_check_branch
      %184 = sbr.rel (%p182) target = $region29
    $region28: #{tpu_custom_call.1} parent=1 // pred_region
      %v185 = vld [vmem:[#allocation2] sm:$0xff]
      %v186 = vadd.f32 %v185, %v177
      %187 = vst [vmem:[#allocation2] sm:$0xff] %v186
    $region29: #{tpu_custom_call.1} parent=1 // pred_fallthru
      _
    %p188 = scmp.gt.s32.totalorder %s180, 1
    // Predicated region
    $region30: #{tpu_custom_call.1} parent=1 // pred_check
      %p189 = pneg %p188
    $region31: #{tpu_custom_call.1} parent=1 // pred_check_branch
      %191 = sbr.rel (%p189) target = $region33
    $region32: #{tpu_custom_call.1} parent=1 // pred_region
      %v192 = vlaneseq
      %v193 = vshrl.u32 %v192, 7
      %v194 = vstv %s179
      %v195 = vadd.s32 %v194, %v193
      %vm196 = vcmp.lt.s32.totalorder %v195, 1
      %v197 = vld [vmem:[#allocation2] sm:$0xff]
      %v198 = vsel %vm196, %v177, 0.0
      %v199 = vadd.f32 %v197, %v198
      %200 = vst [vmem:[#allocation2] sm:$0xff] %v199
    $region33: #{tpu_custom_call.1} parent=1 // pred_fallthru
      _
    // Predicated region
    $region34: #{tpu_custom_call.1} parent=1 // pred_check
      %p201 = pneg %p164
    $region35: #{tpu_custom_call.1} parent=1 // pred_check_branch
      %203 = sbr.rel (%p201) target = $region37
    $region36: #{tpu_custom_call.1} parent=1 // pred_region
      %v204 = vld [vmem:[#allocation2] sm:$0xff]
      %205 = vadd.xlane.f32.xlu0 %v204
      %v206 = vpop.xlane.xlu0 %205
      %v207 = vrot.slane %v206, 4
      %v208 = vadd.f32 %v206, %v207
      %v209 = vrot.slane %v208, 2
      %v210 = vadd.f32 %v208, %v209
      %v211 = vrot.slane %v210, 1
      %v212 = vadd.f32 %v210, %v211
      %s213 = vtos %v212
      %s214 = scalar_lea.smem [#allocation6], 0
      %215 = sst [smem:[%s214]] %s213
    $region37: #{tpu_custom_call.1} parent=1 // pred_fallthru
      _
    // Predicated region
    $region38: #{tpu_custom_call.1} parent=1 // pred_check
      _
    $region39: #{tpu_custom_call.1} parent=1 // pred_check_branch
      %217 = sbr.rel (0) target = $region41
    $region40: #{tpu_custom_call.1} parent=1 // pred_region
      %s219 = ssub.s32 16, 16
      %220 = vsyncadd [#allocation5], %s219
      %223 = dma.smem_to_hbm [#allocation6], 16, %s4, [#allocation5]
    $region41: #{tpu_custom_call.1} parent=1 // pred_fallthru
      _
    // Predicated region
    $region42: #{tpu_custom_call.1} parent=1 // pred_check
      _
    $region43: #{tpu_custom_call.1} parent=1 // pred_check_branch
      %225 = sbr.rel (0) target = $region45
    $region44: #{tpu_custom_call.1} parent=1 // pred_region
      %226 = dma.done [#allocation5], 16
    $region45: #{tpu_custom_call.1} parent=1 // pred_fallthru
      _
    %227 = sfence
    %228 = vsyncpa [#allocation4], 1
    %229 = vsyncpa [#allocation5], 1

</llo_original>
